<compile_context>
chip_gen: v7x
topology: tpu7x:2x2x1
jax: 0.10.0
libtpu: 0.0.40
codegen_flags: <defaults>
</compile_context>

<pallas_src>
import functools

import jax
import jax.numpy as jnp
import numpy as np
from jax import lax
from jax.experimental import pallas as pl
from jax.experimental.pallas import tpu as pltpu


def _round_up(v, m):
    return ((v + m - 1) // m) * m


# ----------------------------------------------------------------------------
# Parameter preprocessing (plain JAX, run ONCE per weight update, not per call)
# ----------------------------------------------------------------------------
def _rotate_filter(w, angle):
    """Rotate spatial dims of w [..., k, k] by `angle` (CCW) about the kernel
    center using bilinear sampling (exact for multiples of 90 deg, odd k)."""
    # TODO(synk): generate_rot_filter_bank source not provided; CCW bilinear
    # rotation about the kernel center is assumed (exact for the C4 group).
    k = w.shape[-1]
    c = (k - 1) / 2.0
    idx = jnp.arange(k, dtype=jnp.float32)
    ys, xs = jnp.meshgrid(idx, idx, indexing="ij")
    cos, sin = jnp.cos(angle), jnp.sin(angle)
    y0, x0 = ys - c, xs - c
    # inverse rotation: target (y, x) samples source coordinates
    sy = cos * y0 + sin * x0 + c
    sx = -sin * y0 + cos * x0 + c
    yf, xf = jnp.floor(sy), jnp.floor(sx)
    wy, wx = sy - yf, sx - xf

    def gather(yi, xi):
        valid = (yi >= 0) & (yi < k) & (xi >= 0) & (xi < k)
        yc = jnp.clip(yi, 0, k - 1).astype(jnp.int32)
        xc = jnp.clip(xi, 0, k - 1).astype(jnp.int32)
        return jnp.where(valid, w[..., yc, xc], 0.0)

    v00 = gather(yf, xf)
    v01 = gather(yf, xf + 1)
    v10 = gather(yf + 1, xf)
    v11 = gather(yf + 1, xf + 1)
    return ((1 - wy) * (1 - wx) * v00 + (1 - wy) * wx * v01
            + wy * (1 - wx) * v10 + wy * wx * v11)


def generate_rot_filter_bank(weights, group_order):
    """weights [N, Cin, k, k] -> [N, group_order, Cin, k, k]."""
    angles = 2.0 * jnp.pi * jnp.arange(group_order) / group_order
    return jnp.stack([_rotate_filter(weights, a) for a in angles], axis=1)


def build_relaxed_conv_weights(kernel, relaxed_weights, group_order):
    """kernel [nfb, Cout, Cin, k, k], relaxed_weights [nfb, G]
    -> [Cout*G, Cin, k, k] (OIHW)."""
    nfb, cout, cin, k, _ = kernel.shape
    fb = generate_rot_filter_bank(kernel.reshape(nfb * cout, cin, k, k), group_order)
    fb = fb.reshape(nfb, cout, group_order, cin, k, k)
    rcw = jnp.sum(
        relaxed_weights[:, None, :, None, None, None] * fb, axis=0
    )  # [Cout, G, Cin, k, k]
    return rcw.reshape(cout * group_order, cin, k, k)


def prepare_relaxed_lifting_weights(kernel, relaxed_weights, group_order):
    """One-time weight preparation (hoisted out of the per-call path):
    rotated filter bank + relaxed sum, reorder columns to (ky, kx, cin),
    zero-pad the contraction dim to a multiple of 16, cast to bf16.

    Returns w2 of shape [Cout*G, Kpad] (bf16)."""
    nfb, cout, cin, k, _ = kernel.shape
    w_oihw = build_relaxed_conv_weights(kernel, relaxed_weights, group_order)
    cout_total = cout * group_order
    kdim = k * k * cin
    kpad = _round_up(kdim, 16)
    w2 = jnp.transpose(w_oihw, (0, 2, 3, 1)).reshape(cout_total, kdim)
    if kpad > kdim:
        w2 = jnp.pad(w2, ((0, 0), (0, kpad - kdim)))
    return w2.astype(jnp.bfloat16)


# ----------------------------------------------------------------------------
# Pallas kernel: pure MXU matmul + fused leaky_relu (one matmul per grid step)
# ----------------------------------------------------------------------------
def _matmul_leaky_kernel(w_ref, p_ref, o_ref, *, activation, neg_slope=0.01):
    # w_ref: (Cout*G, Kpad)   bf16  (column order = (ky, kx, cin), zero-padded)
    # p_ref: (1, Kpad, N)     bf16  (im2col patches for this batch, N = Ho*Wo)
    # o_ref: (1, Cout*G, N)   bf16  (lane-dense flattened output rows)
    acc = jnp.dot(w_ref[...], p_ref[0], preferred_element_type=jnp.float32)
    if activation:
        acc = jnp.where(acc >= 0, acc, neg_slope * acc)   # leaky_relu in f32
    o_ref[0] = acc.astype(o_ref.dtype)


def relaxed_lifting_conv_cn_forward(x, w2, *, cout, group_order, cin, k,
                                    activation=True, out_dtype=jnp.bfloat16):
    """x [B, Cin, H, W], w2 = prepare_relaxed_lifting_weights(...)
    -> [B, Cout, G, Ho, Wo] (matches the PyTorch module, bf16 output)."""
    b, cin_x, h, w = x.shape
    assert cin_x == cin
    pad = (k - 1) // 2          # note: reproduces 'same' output only for odd k
    ho = h + 2 * pad - k + 1
    wo = w + 2 * pad - k + 1
    n = ho * wo
    cout_total = cout * group_order
    kdim = k * k * cin
    kpad = w2.shape[1]
    assert kpad >= kdim

    # Wrapper-side im2col (layout plumbing, per perf review): lane-dense
    # bf16 [B, Kpad, Ho*Wo] patch matrix so the kernel is a pure MXU matmul.
    # Row index = (ky*k + kx)*Cin + c, matching the w2 column order.
    # TODO(synk): at production H/W, move this in-kernel with halo row-tiled
    # input blocks (overlapping index_map or make_async_copy double-buffering)
    # and pltpu.roll-based taps so the patch matrix never round-trips HBM and
    # the working set stays within v7x's 64 MiB VMEM.
    xb = x.astype(jnp.bfloat16)
    x_pad = jnp.pad(xb, ((0, 0), (0, 0), (pad, pad), (pad, pad)))
    taps = []
    for ky in range(k):
        for kx in range(k):
            taps.append(x_pad[:, :, ky:ky + ho, kx:kx + wo].reshape(b, cin, n))
    patches = jnp.concatenate(taps, axis=1)               # [B, k*k*Cin, N]
    if kpad > kdim:
        patches = jnp.pad(patches, ((0, 0), (0, kpad - kdim), (0, 0)))

    out_flat = pl.pallas_call(
        functools.partial(_matmul_leaky_kernel, activation=activation),
        out_shape=jax.ShapeDtypeStruct((b, cout_total, n), out_dtype),
        grid=(b,),
        in_specs=[
            pl.BlockSpec((cout_total, kpad), lambda i: (0, 0)),
            pl.BlockSpec((1, kpad, n), lambda i: (i, 0, 0)),
        ],
        out_specs=pl.BlockSpec((1, cout_total, n), lambda i: (i, 0, 0)),
        compiler_params=pltpu.CompilerParams(
            dimension_semantics=("parallel",),     # batch -> v7x megacore split
            vmem_limit_bytes=32 * 1024 * 1024),
    )(w2, patches)

    # free reshape: [B, Cout*G, Ho*Wo] -> [B, Cout, G, Ho, Wo]
    return out_flat.reshape(b, cout, group_order, ho, wo)


# ----------------------------------------------------------------------------
# Pure-JAX reference (numerical sanity check only)
# ----------------------------------------------------------------------------
def _reference(x, kernel, relaxed_weights, group_order, activation=True,
               quantize_bf16=False):
    nfb, cout, cin, k, _ = kernel.shape
    pad = (k - 1) // 2
    w_oihw = build_relaxed_conv_weights(kernel, relaxed_weights, group_order)
    xf = x.astype(jnp.float32)
    wf = w_oihw.astype(jnp.float32)
    if quantize_bf16:
        # mirror the operand quantization done by the Pallas path
        xf = xf.astype(jnp.bfloat16).astype(jnp.float32)
        wf = wf.astype(jnp.bfloat16).astype(jnp.float32)
    y = lax.conv_general_dilated(
        xf, wf, window_strides=(1, 1),
        padding=[(pad, pad), (pad, pad)],
        dimension_numbers=("NCHW", "OIHW", "NCHW"),
        precision=lax.Precision.HIGHEST)
    y = y.reshape(x.shape[0], cout, group_order, y.shape[-2], y.shape[-1])
    if activation:
        y = jnp.where(y >= 0, y, 0.01 * y)
    if quantize_bf16:
        # mirror the bf16 output store of the Pallas path
        y = y.astype(jnp.bfloat16).astype(jnp.float32)
    return y


if __name__ == "__main__":
    # small shapes consistent with the module
    B, Cin, H, W = 2, 4, 16, 16
    Cout, K, G, NFB = 8, 3, 4, 3

    key = jax.random.PRNGKey(0)
    k1, k2, k3 = jax.random.split(key, 3)

    x = jax.random.normal(k1, (B, Cin, H, W), dtype=jnp.float32)

    # deterministic parameter init (kaiming_uniform-like bound for the kernel;
    # relaxed_weights = ones + small perturbation so the relaxed sum is non-trivial)
    fan_in = Cin * K * K
    bound = 1.0 / np.sqrt(fan_in)
    kernel = jax.random.uniform(k2, (NFB, Cout, Cin, K, K),
                                minval=-bound, maxval=bound, dtype=jnp.float32)
    relaxed_weights = jnp.ones((NFB, G), jnp.float32) + 0.1 * jax.random.normal(
        k3, (NFB, G), dtype=jnp.float32)

    # Parameter-side work (rotated filter bank, relaxed sum, reorder, bf16 cast)
    # is done ONCE here, not on every forward call.
    w2 = jax.block_until_ready(
        prepare_relaxed_lifting_weights(kernel, relaxed_weights, G))

    fwd = jax.jit(functools.partial(
        relaxed_lifting_conv_cn_forward,
        cout=Cout, group_order=G, cin=Cin, k=K, activation=True))

    out = jax.block_until_ready(fwd(x, w2))
    assert out.shape == (B, Cout, G, H, W), out.shape
    out_f32 = np.asarray(out.astype(jnp.float32))

    # Check 1: tight check against a reference using the same bf16-quantized
    # operands and bf16 output store (isolates the Pallas kernel's math).
    ref_q = _reference(x, kernel, relaxed_weights, G, activation=True,
                       quantize_bf16=True)
    np.testing.assert_allclose(out_f32, np.asarray(ref_q), rtol=1e-2, atol=1e-2)

    # Check 2: loose check against full-f32 module semantics (bf16 operands at
    # contraction depth k*k*Cin=36 plus bf16 output need ~1e-2-scale tolerance).
    ref = _reference(x, kernel, relaxed_weights, G, activation=True,
                     quantize_bf16=False)
    np.testing.assert_allclose(out_f32, np.asarray(ref), rtol=5e-2, atol=5e-2)

    print("KERNEL_OK")
</pallas_src>

<mosaic_0001>
module attributes {stable_mosaic.version = 11 : i64} {
  func.func @_matmul_leaky_kernel(%arg0: i32, %arg1: memref<32x48xbf16, #tpu.memory_space<vmem>>, %arg2: memref<1x48x256xbf16, #tpu.memory_space<vmem>>, %arg3: memref<1x32x256xbf16, #tpu.memory_space<vmem>>) attributes {dimension_semantics = [#tpu.dimension_semantics<parallel>], iteration_bounds = array<i64: 2>, scalar_prefetch = 0 : i64, scratch_operands = 0 : i64, tpu.core_type = #tpu.core_type<tc>, window_params = [{pipeline_mode = #tpu.pipeline_mode<synchronous>, transform_indices = @transform_0, window_bounds = array<i64: 32, 48>}, {transform_indices = @transform_1, window_bounds = array<i64: 1, 48, 256>}, {transform_indices = @transform_2, window_bounds = array<i64: 1, 32, 256>}]} {
    %c0 = arith.constant 0 : index
    %c0_0 = arith.constant 0 : index
    %0 = vector.load %arg1[%c0, %c0_0] : memref<32x48xbf16, #tpu.memory_space<vmem>>, vector<32x48xbf16>
    %c0_1 = arith.constant 0 : index
    %c0_2 = arith.constant 0 : index
    %c0_3 = arith.constant 0 : index
    %1 = vector.load %arg2[%c0_1, %c0_2, %c0_3] : memref<1x48x256xbf16, #tpu.memory_space<vmem>>, vector<1x48x256xbf16>
    %2 = vector.shape_cast %1 : vector<1x48x256xbf16> to vector<48x256xbf16>
    %cst = arith.constant dense<0.000000e+00> : vector<32x256xf32>
    %3 = tpu.matmul %0, %2, %cst {dimension_numbers = #tpu.dot_dimension_numbers<[1], [0], [0], [1], [0, 0, 1, 1], [], []>} : vector<32x48xbf16>, vector<48x256xbf16>, vector<32x256xf32> -> vector<32x256xf32>
    %cst_4 = arith.constant 0.000000e+00 : f32
    %4 = vector.broadcast %cst_4 : f32 to vector<32x256xf32>
    %5 = arith.cmpf oge, %3, %4 : vector<32x256xf32>
    %cst_5 = arith.constant 0.00999999977 : f32
    %6 = vector.broadcast %cst_5 : f32 to vector<32x256xf32>
    %7 = arith.mulf %6, %3 : vector<32x256xf32>
    %8 = arith.select %5, %3, %7 : vector<32x256xi1>, vector<32x256xf32>
    %9 = arith.truncf %8 : vector<32x256xf32> to vector<32x256xbf16>
    %c0_6 = arith.constant 0 : index
    %c0_7 = arith.constant 0 : index
    %c0_8 = arith.constant 0 : index
    %10 = vector.load %arg3[%c0_6, %c0_7, %c0_8] : memref<1x32x256xbf16, #tpu.memory_space<vmem>>, vector<1x32x256xbf16>
    %11 = vector.shape_cast %10 : vector<1x32x256xbf16> to vector<32x256xbf16>
    %12 = vector.shape_cast %9 : vector<32x256xbf16> to vector<1x32x256xbf16>
    tpu.vector_store %arg3[%c0_6, %c0_7, %c0_8], %12 {strides = array<i32>} : memref<1x32x256xbf16, #tpu.memory_space<vmem>>, vector<1x32x256xbf16>,
    return
  }
  func.func @transform_0(%arg0: i32) -> (i32, i32) {
    %c0_i32 = arith.constant 0 : i32
    %c0_i32_0 = arith.constant 0 : i32
    %c0_i32_1 = arith.constant 0 : i32
    return %c0_i32, %c0_i32_0 : i32, i32
  }
  func.func @transform_1(%arg0: i32) -> (i32, i32, i32) {
    %c0_i32 = arith.constant 0 : i32
    %c0_i32_0 = arith.constant 0 : i32
    %c0_i32_1 = arith.constant 0 : i32
    return %arg0, %c0_i32, %c0_i32_0 : i32, i32, i32
  }
  func.func @transform_2(%arg0: i32) -> (i32, i32, i32) {
    %c0_i32 = arith.constant 0 : i32
    %c0_i32_0 = arith.constant 0 : i32
    %c0_i32_1 = arith.constant 0 : i32
    return %arg0, %c0_i32, %c0_i32_0 : i32, i32, i32
  }
}

</mosaic_0001>

<llo_original>
// kernel: relaxed_lifting_conv_cn_forward.1
$region0: #{relaxed_lifting_conv_cn_forward.1}
  #allocation0 [shape = 'u32[]', space=smem, size = 0x4, offset = 0x4, fixed_abs, tag = 'smem constant byte address 0x4 - core index']
  #allocation1 [shape = 'u32[144,128]{1,0:T(1,128)}', space=vmem, size = 0x12000, scoped, tag = 'internal scratch']
  %s0 = inlined_call_operand.vmem [shape: bf16[32,48], index: 0, kind: input, shape index: {}]
  %s1 = inlined_call_operand.vmem [shape: bf16[2,48,256], index: 1, kind: input, shape index: {}]
  %s2 = inlined_call_operand.vmem [shape: bf16[2,32,256], index: 2, kind: output, shape index: {}]
  %s3 = sld [smem:[#allocation0]]
  $region41: #{relaxed_lifting_conv_cn_forward.1} parent=0
    _
  %s5 = ssub.s32 1, %s3
  %s6 = scalar_select 0, %s5, %s3
  loop: start=0, step=1, limit=4
  $region2: #{relaxed_lifting_conv_cn_forward.1} parent=0 // loop_pre_header
    _
  $region3: #{relaxed_lifting_conv_cn_forward.1} parent=0 // loop_header
    %s8 = sphi 0, %s12
    %p9 = scmp.ge.s32.totalorder %s8, 4
    %s16 = sphi 0, %s16
    %s18 = sphi 0, %s16
    %s19 = sphi 0, %s18
    %s33 = sphi 0, %s19
    %s39 = sphi 0, %s41
    %s42 = sphi 0, %s39
    %s43 = sphi 0, %s42
    %s59 = sphi 0, %s43
    %s65 = sphi 0, %s67
    %s68 = sphi 0, %s65
    %s69 = sphi 0, %s68
    %s85 = sphi 0, %s69
  $region4: #{relaxed_lifting_conv_cn_forward.1} parent=0 // loop_header_branch
    %11 = sbr.rel (%p9) target = $region8
  $region5: #{relaxed_lifting_conv_cn_forward.1} parent=0 // loop_body
    %s13 = ssub.s32 %s8, 1
    %s14 = ssub.s32 %s8, 2
    %s15 = sadd.s32 %s8, 1
    %s17 = sadd.s32 %s16, 1
    %p20 = scmp.eq.s32.totalorder %s8, 1
    %p21 = scmp.ne.s32.totalorder %s16, %s18
    %p22 = scmp.eq.s32.totalorder %s8, 0
    %p23 = por %p21, %p22
    %p24 = scmp.ne.s32.totalorder %s16, %s18
    %p25 = scmp.eq.s32.totalorder %s13, 1
    %p26 = por %p24, %p25
    %p27 = scmp.ne.s32.totalorder %s18, %s19
    %p28 = scmp.eq.s32.totalorder %s13, 0
    %p29 = por %p27, %p28
    %p30 = scmp.ne.s32.totalorder %s18, %s19
    %p31 = scmp.eq.s32.totalorder %s14, 1
    %p32 = por %p30, %p31
    %p34 = scmp.ne.s32.totalorder %s19, %s33
    %p35 = scmp.eq.s32.totalorder %s14, 0
    %p36 = por %p34, %p35
    %s37 = ssub.s32 %s8, %s15
    %p38 = scmp.eq.s32.totalorder %s37, 0
    %s40 = sadd.s32 %s39, 1
    %s41 = scalar_select %p38, %s39, %s40
    %p44 = pneg %p38
    %p45 = scmp.eq.s32.totalorder %s8, 1
    %p46 = por %p44, %p45
    %p47 = scmp.ne.s32.totalorder %s39, %s42
    %p48 = scmp.eq.s32.totalorder %s8, 0
    %p49 = por %p47, %p48
    %p50 = scmp.ne.s32.totalorder %s39, %s42
    %p51 = scmp.eq.s32.totalorder %s13, 1
    %p52 = por %p50, %p51
    %p53 = scmp.ne.s32.totalorder %s42, %s43
    %p54 = scmp.eq.s32.totalorder %s13, 0
    %p55 = por %p53, %p54
    %p56 = scmp.ne.s32.totalorder %s42, %s43
    %p57 = scmp.eq.s32.totalorder %s14, 1
    %p58 = por %p56, %p57
    %p60 = scmp.ne.s32.totalorder %s43, %s59
    %p61 = scmp.eq.s32.totalorder %s14, 0
    %p62 = por %p60, %p61
    %s63 = ssub.s32 %s8, %s15
    %p64 = scmp.eq.s32.totalorder %s63, 0
    %s66 = sadd.s32 %s65, 1
    %s67 = scalar_select %p64, %s65, %s66
    %p70 = pneg %p64
    %p71 = scmp.eq.s32.totalorder %s8, 1
    %p72 = por %p70, %p71
    %p73 = scmp.ne.s32.totalorder %s65, %s68
    %p74 = scmp.eq.s32.totalorder %s8, 0
    %p75 = por %p73, %p74
    %p76 = scmp.ne.s32.totalorder %s65, %s68
    %p77 = scmp.eq.s32.totalorder %s13, 1
    %p78 = por %p76, %p77
    %p79 = scmp.ne.s32.totalorder %s68, %s69
    %p80 = scmp.eq.s32.totalorder %s13, 0
    %p81 = por %p79, %p80
    %p82 = scmp.ne.s32.totalorder %s68, %s69
    %p83 = scmp.eq.s32.totalorder %s14, 1
    %p84 = por %p82, %p83
    %p86 = scmp.ne.s32.totalorder %s69, %s85
    %p87 = scmp.eq.s32.totalorder %s14, 0
    %p88 = por %p86, %p87
    %p89 = scmp.le.s32.totalorder 1, %s8
    %p90 = scmp.lt.s32.totalorder %s8, 3
    %p91 = pnand %p89, %p90
    %p92 = pneg %p91
    // Predicated region
    $region9: #{relaxed_lifting_conv_cn_forward.1} parent=5 // pred_check
      _
    $region10: #{relaxed_lifting_conv_cn_forward.1} parent=5 // pred_check_branch
      %94 = sbr.rel (%p91) target = $region12
    $region11: #{relaxed_lifting_conv_cn_forward.1} parent=5 // pred_region
      %s95 = ssub.s32 %s8, 1
      // Predicated region
      $region13: #{relaxed_lifting_conv_cn_forward.1} parent=11 // pred_check
        %p96 = pneg %p29
      $region14: #{relaxed_lifting_conv_cn_forward.1} parent=11 // pred_check_branch
        %98 = sbr.rel (%p96) target = $region16
      $region15: #{relaxed_lifting_conv_cn_forward.1} parent=11 // pred_region
        _
      $region16: #{relaxed_lifting_conv_cn_forward.1} parent=11 // pred_fallthru
        _
    $region12: #{relaxed_lifting_conv_cn_forward.1} parent=5 // pred_fallthru
      _
    %p99 = scmp.lt.s32.totalorder %s8, 2
    // Predicated region
    $region17: #{relaxed_lifting_conv_cn_forward.1} parent=5 // pred_check
      %p100 = pneg %p99
    $region18: #{relaxed_lifting_conv_cn_forward.1} parent=5 // pred_check_branch
      %102 = sbr.rel (%p100) target = $region20
    $region19: #{relaxed_lifting_conv_cn_forward.1} parent=5 // pred_region
      // Predicated region
      $region21: #{relaxed_lifting_conv_cn_forward.1} parent=19 // pred_check
        %p103 = pneg %p49
      $region22: #{relaxed_lifting_conv_cn_forward.1} parent=19 // pred_check_branch
        %105 = sbr.rel (%p103) target = $region24
      $region23: #{relaxed_lifting_conv_cn_forward.1} parent=19 // pred_region
        %p106 = scmp.lt.s32.totalorder %s8, 1
        %s107 = scalar_select %p106, %s8, 1
        %s108 = smul.addr %s107, 12
        %s109 = smul.addr %s108, 4
        %s110 = scalar_lea.vmem %s1, %s109
      $region24: #{relaxed_lifting_conv_cn_forward.1} parent=19 // pred_fallthru
        _
    $region20: #{relaxed_lifting_conv_cn_forward.1} parent=5 // pred_fallthru
      _
    %p111 = scmp.le.s32.totalorder 1, %s8
    %p112 = scmp.lt.s32.totalorder %s8, 3
    %p113 = pnand %p111, %p112
    %p114 = pneg %p113
    // Predicated region
    $region25: #{relaxed_lifting_conv_cn_forward.1} parent=5 // pred_check
      _
    $region26: #{relaxed_lifting_conv_cn_forward.1} parent=5 // pred_check_branch
      %116 = sbr.rel (%p113) target = $region28
    $region27: #{relaxed_lifting_conv_cn_forward.1} parent=5 // pred_region
      %s117 = ssub.s32 %s8, 1
      %p118 = pneg %p29
      %p119 = pneg %p26
      %p120 = scmp.lt.s32.totalorder %s13, 1
      %s121 = scalar_select %p120, %s13, 1
      %s122 = smul.addr %s121, 12
      %s123 = smul.addr %s122, 4
      %s124 = scalar_lea.vmem %s1, %s123
      %p125 = pneg %p55
      %p126 = pneg %p52
      %p127 = pneg %p81
      %p128 = pneg %p78
      %p129 = scmp.lt.s32.totalorder %s13, 1
      %s130 = scalar_select %p129, %s13, 1
      %s131 = smul.addr %s130, 8
      %s132 = smul.addr %s131, 4
      %s133 = scalar_lea.vmem %s2, %s132
      %p134 = scmp.lt.s32.totalorder %s13, 1
      %s135 = scalar_select %p134, %s13, 1
      %s136 = smul.addr %s135, 12
      %s137 = smul.addr %s136, 4
      %s138 = scalar_lea.vmem %s1, %s137
      %p139 = scmp.lt.s32.totalorder %s13, 1
      %s140 = scalar_select %p139, %s13, 1
      %s141 = smul.addr %s140, 8
      %s142 = smul.addr %s141, 4
      %s143 = scalar_lea.vmem %s2, %s142
      %v145 = vld [vmem:[%s0] sm:$0xf]
      %v146 = vld [vmem:[%s0 + $0x4] sm:$0xf]
      %v147 = vld [vmem:[%s0 + $0x8] sm:$0xf]
      %v148 = vld [vmem:[%s0 + $0xc] sm:$0xf]
      %v149 = vld [vmem:[%s138] sm:$0xff]
      %v150 = vld [vmem:[%s138 + $0x8] sm:$0xff]
      %v151 = vld [vmem:[%s138 + $0x10] sm:$0xff]
      %v152 = vld [vmem:[%s138 + $0x18] sm:$0xff]
      %v153 = vld [vmem:[%s138 + $0x20] sm:$0xff]
      %v154 = vld [vmem:[%s138 + $0x28] sm:$0xff]
      %v159 = vunpack.c.l.b16 %v145
      %v160 = vunpack.c.l.b16 %v146
      %v161 = vunpack.c.l.b16 %v147
      %v162 = vunpack.c.l.b16 %v148
      %v163 = vpack.c.b16 %v160, %v159
      %v164 = vpack.c.b16 %v162, %v161
      %v171 = vunpack.c.l.b16 %v149
      %v172 = vunpack.c.h.b16 %v149
      %v173 = vunpack.c.l.b16 %v150
      %v174 = vunpack.c.h.b16 %v150
      %v175 = vunpack.c.l.b16 %v151
      %v176 = vunpack.c.h.b16 %v151
      %v177 = vunpack.c.l.b16 %v152
      %v178 = vunpack.c.h.b16 %v152
      %v179 = vunpack.c.l.b16 %v153
      %v180 = vunpack.c.h.b16 %v153
      %v181 = vunpack.c.l.b16 %v154
      %v182 = vunpack.c.h.b16 %v154
      %v183 = vpack.c.b16 %v173, %v171
      %v184 = vpack.c.b16 %v174, %v172
      %v185 = vpack.c.b16 %v177, %v175
      %v186 = vpack.c.b16 %v178, %v176
      %v187 = vpack.c.b16 %v181, %v179
      %v188 = vpack.c.b16 %v182, %v180
      %vm195 = vcmask 392192
      %v197 = vsel %vm195, %v163, 0
      %v200 = vsel %vm195, %v164, 0
      %202 = vmatprep.subr.bf16.mxu0 %v184
      %203 = vmatpush1.bf16.msra.mxu0 %v183
      %204 = vmatprep.subr.bf16.mxu0 %v186
      %205 = vmatpush1.bf16.msra.mxu0 %v185
      %206 = vmatprep.subr.bf16.mxu0 %v188
      %207 = vmatpush1.bf16.msra.mxu0 %v187
      %208 = vmatprep.subr.bf16.mxu0 0
      %209 = vmatpush1.bf16.msra.mxu0 0
      %210 = vmatprep.subr.bf16.mxu0 0
      %211 = vmatpush1.bf16.msra.mxu0 0
      %212 = vmatprep.subr.bf16.mxu0 0
      %213 = vmatpush1.bf16.msra.mxu0 0
      %214 = vmatprep.subr.bf16.mxu0 0
      %215 = vmatpush1.bf16.msra.mxu0 0
      %216 = vmatprep.subr.bf16.mxu0 0
      %217 = vmatpush1.bf16.msra.mxu0 0
      %218 = vmatprep.subr.bf16.mxu0 0
      %219 = vmatpush1.bf16.msra.mxu0 0
      %220 = vmatprep.subr.bf16.mxu0 0
      %221 = vmatpush1.bf16.msra.mxu0 0
      %222 = vmatprep.subr.bf16.mxu0 0
      %223 = vmatpush1.bf16.msra.mxu0 0
      %224 = vmatprep.subr.bf16.mxu0 0
      %225 = vmatpush1.bf16.msra.mxu0 0
      %226 = vmatprep.subr.bf16.mxu0 0
      %227 = vmatpush1.bf16.msra.mxu0 0
      %228 = vmatprep.subr.bf16.mxu0 0
      %229 = vmatpush1.bf16.msra.mxu0 0
      %230 = vmatprep.subr.bf16.mxu0 0
      %231 = vmatpush1.bf16.msra.mxu0 0
      %232 = vmatprep.subr.bf16.mxu0 0
      %233 = vmatpush1.bf16.msra.mxu0 0
      %234 = vmatprep.mubr.bf16.mxu0 0
      %235 = vmatmul.mubr.bf16.gmra.mrb[0].mxu0 %v197
      %v236 = vpop.f32.mrb[0].mxu0
      %v237 = vadd.f32 0.0, %v236
      %v238 = vpop.f32.mrb[0].mxu0
      %v239 = vadd.f32 0.0, %v238
      %v240 = vpop.f32.mrb[0].mxu0
      %v241 = vadd.f32 0.0, %v240
      %v242 = vpop.f32.mrb[0].mxu0
      %v243 = vadd.f32 0.0, %v242
      %244 = vmatprep.mubr.bf16.mxu0 0
      %245 = vmatmul.mubr.bf16.gmra.mrb[0].mxu0 %v200
      %v246 = vpop.f32.mrb[0].mxu0
      %v247 = vadd.f32 0.0, %v246
      %v248 = vpop.f32.mrb[0].mxu0
      %v249 = vadd.f32 0.0, %v248
      %v250 = vpop.f32.mrb[0].mxu0
      %v251 = vadd.f32 0.0, %v250
      %v252 = vpop.f32.mrb[0].mxu0
      %v253 = vadd.f32 0.0, %v252
      %254 = vdwg.mxu0
      %vm255 = vcmp.ge.f32.partialorder %v237, 0.0
      %vm256 = vcmp.ge.f32.partialorder %v239, 0.0
      %vm257 = vcmp.ge.f32.partialorder %v241, 0.0
      %vm258 = vcmp.ge.f32.partialorder %v243, 0.0
      %vm259 = vcmp.ge.f32.partialorder %v247, 0.0
      %vm260 = vcmp.ge.f32.partialorder %v249, 0.0
      %vm261 = vcmp.ge.f32.partialorder %v251, 0.0
      %vm262 = vcmp.ge.f32.partialorder %v253, 0.0
      %v263 = vmul.f32 %v237, 0.01
      %v264 = vmul.f32 %v239, 0.01
      %v265 = vmul.f32 %v241, 0.01
      %v266 = vmul.f32 %v243, 0.01
      %v267 = vmul.f32 %v247, 0.01
      %v268 = vmul.f32 %v249, 0.01
      %v269 = vmul.f32 %v251, 0.01
      %v270 = vmul.f32 %v253, 0.01
      %v271 = vsel %vm255, %v237, %v263
      %v272 = vsel %vm256, %v239, %v264
      %v273 = vsel %vm257, %v241, %v265
      %v274 = vsel %vm258, %v243, %v266
      %v275 = vsel %vm259, %v247, %v267
      %v276 = vsel %vm260, %v249, %v268
      %v277 = vsel %vm261, %v251, %v269
      %v278 = vsel %vm262, %v253, %v270
      %v279 = vpack.c.bf16 %v273, %v271
      %v280 = vpack.c.bf16 %v274, %v272
      %v281 = vpack.c.bf16 %v277, %v275
      %v282 = vpack.c.bf16 %v278, %v276
      %v287 = vunpack.c.l.b16 %v279
      %v288 = vunpack.c.l.b16 %v280
      %v289 = vunpack.c.h.b16 %v279
      %v290 = vunpack.c.h.b16 %v280
      %v291 = vunpack.c.l.b16 %v281
      %v292 = vunpack.c.l.b16 %v282
      %v293 = vunpack.c.h.b16 %v281
      %v294 = vunpack.c.h.b16 %v282
      %v295 = vpack.c.b16 %v288, %v287
      %v296 = vpack.c.b16 %v290, %v289
      %v297 = vpack.c.b16 %v292, %v291
      %v298 = vpack.c.b16 %v294, %v293
      %303 = vst [vmem:[%s143] sm:$0xff] %v295
      %304 = vst [vmem:[%s143 + $0x8] sm:$0xff] %v296
      %305 = vst [vmem:[%s143 + $0x10] sm:$0xff] %v297
      %306 = vst [vmem:[%s143 + $0x18] sm:$0xff] %v298
      %p307 = scmp.lt.s32.totalorder %s13, 1
      %s308 = scalar_select %p307, %s13, 1
      %s309 = smul.addr %s308, 8
      %s310 = smul.addr %s309, 4
      %s311 = scalar_lea.vmem %s2, %s310
      // Predicated region
      $region29: #{relaxed_lifting_conv_cn_forward.1} parent=27 // pred_check
        %p312 = pneg %p78
      $region30: #{relaxed_lifting_conv_cn_forward.1} parent=27 // pred_check_branch
        %314 = sbr.rel (%p312) target = $region32
      $region31: #{relaxed_lifting_conv_cn_forward.1} parent=27 // pred_region
        _
      $region32: #{relaxed_lifting_conv_cn_forward.1} parent=27 // pred_fallthru
        _
    $region28: #{relaxed_lifting_conv_cn_forward.1} parent=5 // pred_fallthru
      _
    %p315 = scmp.le.s32.totalorder 2, %s8
    // Predicated region
    $region33: #{relaxed_lifting_conv_cn_forward.1} parent=5 // pred_check
      %p316 = pneg %p315
    $region34: #{relaxed_lifting_conv_cn_forward.1} parent=5 // pred_check_branch
      %318 = sbr.rel (%p316) target = $region36
    $region35: #{relaxed_lifting_conv_cn_forward.1} parent=5 // pred_region
      %s319 = ssub.s32 %s8, 2
      // Predicated region
      $region37: #{relaxed_lifting_conv_cn_forward.1} parent=35 // pred_check
        %p320 = pneg %p84
      $region38: #{relaxed_lifting_conv_cn_forward.1} parent=35 // pred_check_branch
        %322 = sbr.rel (%p320) target = $region40
      $region39: #{relaxed_lifting_conv_cn_forward.1} parent=35 // pred_region
        %p323 = scmp.lt.s32.totalorder %s14, 1
        %s324 = scalar_select %p323, %s14, 1
        %s325 = smul.addr %s324, 8
        %s326 = smul.addr %s325, 4
        %s327 = scalar_lea.vmem %s2, %s326
      $region40: #{relaxed_lifting_conv_cn_forward.1} parent=35 // pred_fallthru
        _
    $region36: #{relaxed_lifting_conv_cn_forward.1} parent=5 // pred_fallthru
      _
  $region6: #{relaxed_lifting_conv_cn_forward.1} parent=0 // loop_footer
    %s12 = sadd.s32 1, %s8
  $region7: #{relaxed_lifting_conv_cn_forward.1} parent=0 // loop_footer_branch
    %7 = sbr.rel target = $region3
  $region8: #{relaxed_lifting_conv_cn_forward.1} parent=0 // loop_exit
    _

</llo_original>
